<compile_context>
chip_gen: v7x
topology: tpu7x:2x2x1
jax: 0.10.0
libtpu: 0.0.40
codegen_flags: <defaults>
</compile_context>

<pallas_src>
import functools

import jax
import jax.numpy as jnp
from jax.experimental import pallas as pl
from jax.experimental.pallas import tpu as pltpu


def _ce_kernel(pred_ref, tgt_ref, out_ref, acc_ref, *,
               hi, lo, n_total, block_rows, tiles_per_core):
    """Unified cross-entropy kernel (plain CE: hi=1, lo=0)."""
    core = pl.program_id(0)
    inner = pl.program_id(1)

    @pl.when(inner == 0)
    def _():
        acc_ref[...] = jnp.zeros_like(acc_ref)

    pred = pred_ref[...].astype(jnp.float32)               # [TN, C] cast in VMEM
    tn, c = pred.shape

    # The only two per-row (axis=1) reductions we actually need.
    mx = jnp.max(pred, axis=1, keepdims=True)              # [TN, 1]
    shifted = pred - mx
    lse = jnp.log(jnp.sum(jnp.exp(shifted), axis=1, keepdims=True))  # [TN, 1]

    # Mask rows past the true batch size (partial last tile and the
    # over-provisioned per-core tiles). Keep the select (NaN-safe) — do NOT
    # replace with multiply-by-zero masking.
    tile_idx = core * tiles_per_core + inner               # logical tile index
    row = tile_idx * block_rows + jax.lax.broadcasted_iota(jnp.int32, (tn, 1), 0)
    rowmask = row < n_total                                # [TN, 1]
    sm = jnp.where(rowmask, shifted, 0.0)                  # [TN, C]

    # Weighted full-tile 2D sum: w = hi on target class, lo elsewhere.
    # (1, C) iota broadcast against the (TN, 1) target column.
    col = jax.lax.broadcasted_iota(jnp.int32, (1, c), 1)   # [1, C]
    tgt = tgt_ref[...]                                     # [TN, 1] int32
    hi_f = jnp.float32(hi)
    lo_f = jnp.float32(lo)
    w_term = jnp.sum(jnp.where(col == tgt, hi_f, lo_f) * sm)

    # Row-sum of lse: single-lane column -> cheap sublane reduce.
    l_term = jnp.sum(jnp.where(rowmask, lse, 0.0))

    lse_coef = hi + (c - 1) * lo                           # == 1.0 in both branches
    tile_loss = lse_coef * l_term - w_term                 # scalar

    # TODO(synk): for very large N keep a vector partial (tighter rounding)
    #             instead of a single running scalar per core.
    acc_ref[...] = acc_ref[...] + tile_loss                # broadcast into (1, 128)

    @pl.when(inner == pl.num_programs(1) - 1)
    def _():
        out_ref[...] = acc_ref[...]


def ce_loss(pred, target, *, label_smooth=None, class_num=137,
            block_rows=4096, num_cores=2):
    """Pallas implementation of CELoss.forward. Returns a scalar float32."""
    n, c = pred.shape

    if label_smooth is not None:
        if c != class_num:
            raise ValueError(
                f"class_num ({class_num}) must equal pred.shape[1] ({c}) when "
                "label smoothing is enabled (matches the torch semantics).")
        ls = float(label_smooth)
        lo = ls / (class_num - 1)
        hi = 1.0 - ls
    else:
        lo, hi = 0.0, 1.0

    tgt2d = target.astype(jnp.int32).reshape(n, 1)

    # Batch tile: whole batch if it fits (block == full dim allowed),
    # otherwise a multiple-of-8 row tile.
    if n <= block_rows:
        tn = n
    else:
        tn = max(8, (block_rows // 8) * 8)
    num_tiles = pl.cdiv(n, tn)

    # Split batch tiles across TensorCores via a leading "parallel" grid axis.
    ncores = num_cores if num_tiles >= num_cores else 1
    tiles_per_core = pl.cdiv(num_tiles, ncores)
    last_block = num_tiles - 1

    def rows_map(core, inner):
        # Clamp so over-provisioned per-core tiles never DMA out of bounds.
        # Their rows are masked inside the kernel using the *logical* index.
        return (jnp.minimum(core * tiles_per_core + inner, last_block), 0)

    kernel = functools.partial(
        _ce_kernel, hi=hi, lo=lo, n_total=n, block_rows=tn,
        tiles_per_core=tiles_per_core)

    out = pl.pallas_call(
        kernel,
        out_shape=jax.ShapeDtypeStruct((1, ncores * 128), jnp.float32),
        grid_spec=pltpu.PrefetchScalarGridSpec(
            num_scalar_prefetch=0,
            grid=(ncores, tiles_per_core),
            in_specs=[
                pl.BlockSpec((tn, c), rows_map),   # pred rows tile (native dtype)
                pl.BlockSpec((tn, 1), rows_map),   # target rows tile (int32 column)
            ],
            # One lane-dense (1, 128) accumulator home per core.
            out_specs=pl.BlockSpec((1, 128), lambda core, inner: (0, core)),
            scratch_shapes=[pltpu.VMEM((1, 128), jnp.float32)],
        ),
        compiler_params=pltpu.CompilerParams(
            dimension_semantics=("parallel", "arbitrary"),
            # 4096-row f32 tiles need ~14.6 MiB double-buffered (pred + target);
            # 32 MiB covers block_rows up to ~8192 and is safe on v5e/v6e/v7x.
            vmem_limit_bytes=32 * 1024 * 1024,
        ),
    )(pred, tgt2d)   # pred passed in native dtype; cast to f32 happens in VMEM

    partials = out.reshape(ncores, 128)[:, 0]   # lane 0 of each core's block
    return jnp.sum(partials) / n


def _ref_ce_loss(pred, target, *, label_smooth=None, class_num=137):
    """Pure-JAX reference (mirrors the PyTorch forward)."""
    eps = 1e-12
    pred = pred.astype(jnp.float32)
    if label_smooth is not None:
        logprobs = jax.nn.log_softmax(pred, axis=1)
        onehot = jax.nn.one_hot(target, class_num, dtype=jnp.float32)
        tgt = jnp.clip(onehot, label_smooth / (class_num - 1), 1.0 - label_smooth)
        loss = -jnp.sum(tgt * logprobs, axis=1)
    else:
        gathered = jnp.take_along_axis(pred, target[:, None], axis=1)[:, 0]
        loss = -gathered + jnp.log(jnp.sum(jnp.exp(pred + eps), axis=1))
    return jnp.mean(loss)


if __name__ == "__main__":
    class_num = 137
    label_smooth = 0.1

    key = jax.random.PRNGKey(0)

    # ---- case 1: small batch, single block (grid = (1, 1)) ----
    n = 8
    k1, k2, key = jax.random.split(key, 3)
    pred = jax.random.normal(k1, (n, class_num), dtype=jnp.float32)
    target = jax.random.randint(k2, (n,), 0, class_num, dtype=jnp.int32)

    out_smooth = jax.block_until_ready(
        ce_loss(pred, target, label_smooth=label_smooth, class_num=class_num))
    ref_smooth = _ref_ce_loss(pred, target, label_smooth=label_smooth, class_num=class_num)

    out_plain = jax.block_until_ready(
        ce_loss(pred, target, label_smooth=None, class_num=class_num))
    ref_plain = _ref_ce_loss(pred, target, label_smooth=None, class_num=class_num)

    assert jnp.allclose(out_smooth, ref_smooth, rtol=1e-5, atol=1e-5), (out_smooth, ref_smooth)
    assert jnp.allclose(out_plain, ref_plain, rtol=1e-5, atol=1e-5), (out_plain, ref_plain)

    # ---- case 2: multi-block grid, 2-core split, partial (masked) last tile ----
    n2 = 20
    k3, k4, key = jax.random.split(key, 3)
    pred2 = jax.random.normal(k3, (n2, class_num), dtype=jnp.float32)
    target2 = jax.random.randint(k4, (n2,), 0, class_num, dtype=jnp.int32)

    out_smooth2 = jax.block_until_ready(
        ce_loss(pred2, target2, label_smooth=label_smooth, class_num=class_num, block_rows=8))
    ref_smooth2 = _ref_ce_loss(pred2, target2, label_smooth=label_smooth, class_num=class_num)

    out_plain2 = jax.block_until_ready(
        ce_loss(pred2, target2, label_smooth=None, class_num=class_num, block_rows=8))
    ref_plain2 = _ref_ce_loss(pred2, target2, label_smooth=None, class_num=class_num)

    assert jnp.allclose(out_smooth2, ref_smooth2, rtol=1e-5, atol=1e-5), (out_smooth2, ref_smooth2)
    assert jnp.allclose(out_plain2, ref_plain2, rtol=1e-5, atol=1e-5), (out_plain2, ref_plain2)

    print("KERNEL_OK")
</pallas_src>

<mosaic_0001>
module attributes {stable_mosaic.version = 11 : i64} {
  func.func @_ce_kernel(%arg0: i32, %arg1: i32, %arg2: memref<8x137xf32, #tpu.memory_space<vmem>>, %arg3: memref<8x1xi32, #tpu.memory_space<vmem>>, %arg4: memref<1x128xf32, #tpu.memory_space<vmem>>, %arg5: memref<1x128xf32, #tpu.memory_space<vmem>>) attributes {dimension_semantics = [#tpu.dimension_semantics<parallel>, #tpu.dimension_semantics<arbitrary>], iteration_bounds = array<i64: 1, 1>, scalar_prefetch = 0 : i64, scratch_operands = 1 : i64, tpu.core_type = #tpu.core_type<tc>, window_params = [{transform_indices = @transform_0, window_bounds = array<i64: 8, 137>}, {transform_indices = @transform_1, window_bounds = array<i64: 8, 1>}, {transform_indices = @transform_2, window_bounds = array<i64: 1, 128>}]} {
    %c0_i32 = arith.constant 0 : i32
    %0 = arith.cmpi eq, %arg1, %c0_i32 : i32
    %1 = arith.extui %0 : i1 to i32
    %c0_i32_0 = arith.constant 0 : i32
    %2 = arith.cmpi ne, %1, %c0_i32_0 : i32
    scf.if %2 {
      %cst_19 = arith.constant 0.000000e+00 : f32
      %52 = vector.broadcast %cst_19 : f32 to vector<1x128xf32>
      %c0_20 = arith.constant 0 : index
      %c0_21 = arith.constant 0 : index
      %53 = vector.load %arg5[%c0_20, %c0_21] : memref<1x128xf32, #tpu.memory_space<vmem>>, vector<1x128xf32>
      tpu.vector_store %arg5[%c0_20, %c0_21], %52 {strides = array<i32>} : memref<1x128xf32, #tpu.memory_space<vmem>>, vector<1x128xf32>,
    } else {
    }
    %c0 = arith.constant 0 : index
    %c0_1 = arith.constant 0 : index
    %3 = vector.load %arg2[%c0, %c0_1] : memref<8x137xf32, #tpu.memory_space<vmem>>, vector<8x137xf32>
    %cst = arith.constant dense<0xFF800000> : vector<8xf32>
    %4 = vector.multi_reduction <maximumf>, %3, %cst [1] : vector<8x137xf32> to vector<8xf32>
    %5 = vector.shape_cast %4 : vector<8xf32> to vector<8x1xf32>
    %6 = vector.broadcast %5 : vector<8x1xf32> to vector<8x137xf32>
    %7 = arith.subf %3, %6 : vector<8x137xf32>
    %8 = math.exp %7 : vector<8x137xf32>
    %cst_2 = arith.constant dense<0.000000e+00> : vector<8xf32>
    %9 = vector.multi_reduction <add>, %8, %cst_2 [1] : vector<8x137xf32> to vector<8xf32>
    %10 = vector.shape_cast %9 : vector<8xf32> to vector<8x1xf32>
    %11 = math.log %10 : vector<8x1xf32>
    %c1_i32 = arith.constant 1 : i32
    %12 = arith.muli %arg0, %c1_i32 : i32
    %13 = arith.addi %12, %arg1 : i32
    %c8_i32 = arith.constant 8 : i32
    %14 = arith.muli %13, %c8_i32 : i32
    %15 = tpu.iota {dimensions = array<i32: 0>} : vector<8x1xi32>
    %16 = vector.broadcast %14 : i32 to vector<8x1xi32>
    %17 = arith.addi %16, %15 : vector<8x1xi32>
    %c8_i32_3 = arith.constant 8 : i32
    %18 = vector.broadcast %c8_i32_3 : i32 to vector<8x1xi32>
    %19 = arith.cmpi slt, %17, %18 : vector<8x1xi32>
    %cst_4 = arith.constant 0.000000e+00 : f32
    %20 = vector.shape_cast %19 : vector<8x1xi1> to vector<8x1xi1>
    %21 = vector.broadcast %20 : vector<8x1xi1> to vector<8x137xi1>
    %22 = vector.broadcast %cst_4 : f32 to vector<8x137xf32>
    %23 = arith.select %21, %7, %22 : vector<8x137xi1>, vector<8x137xf32>
    %24 = tpu.iota {dimensions = array<i32: 1>} : vector<1x137xi32>
    %c0_5 = arith.constant 0 : index
    %c0_6 = arith.constant 0 : index
    %25 = vector.load %arg3[%c0_5, %c0_6] : memref<8x1xi32, #tpu.memory_space<vmem>>, vector<8x1xi32>
    %26 = vector.broadcast %24 : vector<1x137xi32> to vector<8x137xi32>
    %27 = vector.broadcast %25 : vector<8x1xi32> to vector<8x137xi32>
    %28 = arith.cmpi eq, %26, %27 : vector<8x137xi32>
    %cst_7 = arith.constant 0.899999976 : f32
    %cst_8 = arith.constant 7.35294132E-4 : f32
    %29 = vector.broadcast %cst_7 : f32 to vector<8x137xf32>
    %30 = vector.broadcast %cst_8 : f32 to vector<8x137xf32>
    %31 = arith.select %28, %29, %30 : vector<8x137xi1>, vector<8x137xf32>
    %32 = arith.mulf %31, %23 : vector<8x137xf32>
    %33 = vector.shape_cast %32 : vector<8x137xf32> to vector<1x8x137xf32>
    %cst_9 = arith.constant dense<0.000000e+00> : vector<1xf32>
    %34 = vector.multi_reduction <add>, %33, %cst_9 [1, 2] : vector<1x8x137xf32> to vector<1xf32>
    %35 = vector.shape_cast %34 : vector<1xf32> to vector<1x1x1xf32>
    %36 = vector.extract %35[0, 0, 0] : f32 from vector<1x1x1xf32>
    %cst_10 = arith.constant 0.000000e+00 : f32
    %37 = vector.broadcast %cst_10 : f32 to vector<8x1xf32>
    %38 = arith.select %19, %11, %37 : vector<8x1xi1>, vector<8x1xf32>
    %39 = vector.shape_cast %38 : vector<8x1xf32> to vector<1x8x1xf32>
    %cst_11 = arith.constant dense<0.000000e+00> : vector<1xf32>
    %40 = vector.multi_reduction <add>, %39, %cst_11 [1, 2] : vector<1x8x1xf32> to vector<1xf32>
    %41 = vector.shape_cast %40 : vector<1xf32> to vector<1x1x1xf32>
    %42 = vector.extract %41[0, 0, 0] : f32 from vector<1x1x1xf32>
    %cst_12 = arith.constant 1.000000e+00 : f32
    %43 = arith.mulf %cst_12, %42 : f32
    %44 = arith.subf %43, %36 : f32
    %c0_13 = arith.constant 0 : index
    %c0_14 = arith.constant 0 : index
    %45 = vector.load %arg5[%c0_13, %c0_14] : memref<1x128xf32, #tpu.memory_space<vmem>>, vector<1x128xf32>
    %46 = vector.broadcast %44 : f32 to vector<1x128xf32>
    %47 = arith.addf %45, %46 : vector<1x128xf32>
    %c0_15 = arith.constant 0 : index
    %c0_16 = arith.constant 0 : index
    %48 = vector.load %arg5[%c0_15, %c0_16] : memref<1x128xf32, #tpu.memory_space<vmem>>, vector<1x128xf32>
    tpu.vector_store %arg5[%c0_15, %c0_16], %47 {strides = array<i32>} : memref<1x128xf32, #tpu.memory_space<vmem>>, vector<1x128xf32>,
    %c0_i32_17 = arith.constant 0 : i32
    %49 = arith.cmpi eq, %arg1, %c0_i32_17 : i32
    %50 = arith.extui %49 : i1 to i32
    %c0_i32_18 = arith.constant 0 : i32
    %51 = arith.cmpi ne, %50, %c0_i32_18 : i32
    scf.if %51 {
      %c0_19 = arith.constant 0 : index
      %c0_20 = arith.constant 0 : index
      %52 = vector.load %arg5[%c0_19, %c0_20] : memref<1x128xf32, #tpu.memory_space<vmem>>, vector<1x128xf32>
      %c0_21 = arith.constant 0 : index
      %c0_22 = arith.constant 0 : index
      %53 = vector.load %arg4[%c0_21, %c0_22] : memref<1x128xf32, #tpu.memory_space<vmem>>, vector<1x128xf32>
      tpu.vector_store %arg4[%c0_21, %c0_22], %52 {strides = array<i32>} : memref<1x128xf32, #tpu.memory_space<vmem>>, vector<1x128xf32>,
    } else {
    }
    return
  }
  func.func @transform_0(%arg0: i32, %arg1: i32) -> (i32, i32) {
    %c1_i32 = arith.constant 1 : i32
    %0 = arith.muli %arg0, %c1_i32 : i32
    %1 = arith.addi %0, %arg1 : i32
    %c0_i32 = arith.constant 0 : i32
    %2 = arith.minsi %1, %c0_i32 : i32
    %c0_i32_0 = arith.constant 0 : i32
    %c0_i32_1 = arith.constant 0 : i32
    return %2, %c0_i32_0 : i32, i32
  }
  func.func @transform_1(%arg0: i32, %arg1: i32) -> (i32, i32) {
    %c1_i32 = arith.constant 1 : i32
    %0 = arith.muli %arg0, %c1_i32 : i32
    %1 = arith.addi %0, %arg1 : i32
    %c0_i32 = arith.constant 0 : i32
    %2 = arith.minsi %1, %c0_i32 : i32
    %c0_i32_0 = arith.constant 0 : i32
    %c0_i32_1 = arith.constant 0 : i32
    return %2, %c0_i32_0 : i32, i32
  }
  func.func @transform_2(%arg0: i32, %arg1: i32) -> (i32, i32) {
    %c0_i32 = arith.constant 0 : i32
    %c0_i32_0 = arith.constant 0 : i32
    return %c0_i32, %arg0 : i32, i32
  }
}

</mosaic_0001>

<llo_original>
// kernel: tpu_custom_call.1
$region0: #{tpu_custom_call.1}
  #allocation0 [shape = 'u32[]', space=smem, size = 0x4, offset = 0x4, fixed_abs, tag = 'smem constant byte address 0x4 - core index']
  #allocation1 [shape = 'u32[144,128]{1,0:T(1,128)}', space=vmem, size = 0x12000, scoped, tag = 'internal scratch']
  #allocation2 [shape = 'f32[1,128]{1,0:T(1,128)}', space=vmem, size = 0x200, scoped, tag = 'scratch operand']
  %s0 = inlined_call_operand.hbm [shape: f32[8,137], index: 0, kind: input, shape index: {}]
  %s1 = inlined_call_operand.vmem [shape: s32[8,1], index: 1, kind: input, shape index: {}]
  %s2 = inlined_call_operand.hbm [shape: f32[1,128], index: 2, kind: output, shape index: {}]
  %s3 = sld [smem:[#allocation0]]
  $region30: #{tpu_custom_call.1} parent=0
    _
  %s5 = ssub.s32 1, %s3
  %s6 = scalar_select 0, %s5, %s3
  $region1: #{tpu_custom_call.1} parent=0
    #allocation3 [shape = 'u8[8192]{0}', space=vmem, size = 0x2000, scoped, tag = 'input window, operand 0, single buffered']
    #allocation4 [shape = 's32[1]{0}', space=sflag, size = 0x4, scoped, tag = 'scoped memory for tpu_custom_call.1']
    #allocation5 [shape = 's32[1]{0}', space=sflag, size = 0x4, scoped, tag = 'scoped memory for tpu_custom_call.1']
    #allocation6 [shape = 'u8[512]{0}', space=vmem, size = 0x400, scoped, tag = 'output window, operand 0, single buffered']
    %7 = vsyncpa [#allocation4], 0
    %8 = vsyncpa [#allocation5], 0
    // Predicated region
    $region2: #{tpu_custom_call.1} parent=1 // pred_check
      _
    $region3: #{tpu_custom_call.1} parent=1 // pred_check_branch
      %10 = sbr.rel (0) target = $region5
    $region4: #{tpu_custom_call.1} parent=1 // pred_region
      %s11 = sadd.s32 0, 0
      %p12 = scmp.lt.s32.totalorder %s11, 0
      %s13 = scalar_select %p12, %s11, 0
      %s15 = ssub.s32 256, 256
      %16 = vsyncadd [#allocation4], %s15
      %s17 = smul.addr %s13, 2
      %s18 = smul.addr %s17, 128
      %s19 = scalar_lea.hbm %s0, %s18
      %s21 = sshll.u32 [#allocation3], 4
      %s22 = int_to_ptr.vmem [resolvable:$true] %s21
      %24 = dma.hbm_to_vmem [thread:$0]  %s19, 256, %s22, [#allocation4]
    $region5: #{tpu_custom_call.1} parent=1 // pred_fallthru
      _
    // Predicated region
    $region6: #{tpu_custom_call.1} parent=1 // pred_check
      _
    $region7: #{tpu_custom_call.1} parent=1 // pred_check_branch
      %26 = sbr.rel (0) target = $region9
    $region8: #{tpu_custom_call.1} parent=1 // pred_region
      %s27 = sadd.s32 0, 0
      %p28 = scmp.lt.s32.totalorder %s27, 0
      %s29 = scalar_select %p28, %s27, 0
      %p30 = scmp.lt.s32.totalorder %s29, 0
      %s31 = scalar_select %p30, %s29, 0
      %s32 = smul.addr %s31, 8
      %s33 = scalar_lea.vmem %s1, %s32
      %s34 = sadd.s32 0, 0
      %p35 = scmp.lt.s32.totalorder %s34, 0
      %s36 = scalar_select %p35, %s34, 0
    $region9: #{tpu_custom_call.1} parent=1 // pred_fallthru
      _
    // Predicated region
    $region10: #{tpu_custom_call.1} parent=1 // pred_check
      _
    $region11: #{tpu_custom_call.1} parent=1 // pred_check_branch
      %38 = sbr.rel (0) target = $region13
    $region12: #{tpu_custom_call.1} parent=1 // pred_region
      %39 = dma.done [#allocation4], 256
    $region13: #{tpu_custom_call.1} parent=1 // pred_fallthru
      _
    %s40 = sadd.s32 0, 0
    %p41 = scmp.lt.s32.totalorder %s40, 0
    %s42 = scalar_select %p41, %s40, 0
    %p43 = scmp.lt.s32.totalorder %s42, 0
    %s44 = scalar_select %p43, %s42, 0
    %s45 = smul.addr %s44, 8
    %s46 = scalar_lea.vmem %s1, %s45
    %s47 = sadd.s32 0, 0
    %p48 = scmp.lt.s32.totalorder %s47, 0
    %s49 = scalar_select %p48, %s47, 0
    %s50 = sadd.s32 0, 0
    %p51 = scmp.lt.s32.totalorder %s50, 0
    %s52 = scalar_select %p51, %s50, 0
    %p53 = scmp.lt.s32.totalorder %s52, 0
    %s54 = scalar_select %p53, %s52, 0
    %s55 = smul.addr %s54, 8
    %s56 = scalar_lea.vmem %s1, %s55
    %s57 = sadd.s32 0, 0
    %p58 = scmp.lt.s32.totalorder %s57, 0
    %s59 = scalar_select %p58, %s57, 0
    %p60 = scmp.eq.s32.totalorder 0, 0
    // Predicated region
    $region14: #{tpu_custom_call.1} parent=1 // pred_check
      %p61 = pneg %p60
    $region15: #{tpu_custom_call.1} parent=1 // pred_check_branch
      %63 = sbr.rel (%p61) target = $region17
    $region16: #{tpu_custom_call.1} parent=1 // pred_region
      %64 = vst [vmem:[#allocation2] sm:$0x1] 0.0
    $region17: #{tpu_custom_call.1} parent=1 // pred_fallthru
      _
    %v65 = vld [vmem:[#allocation3] sm:$0xff]
    %v66 = vld [vmem:[#allocation3 + $0x8] sm:$0xff]
    %vm67 = vcmask 72704
    %v68 = vsel %vm67, %v66, -inf
    %v69 = vmax.f32 %v65, %v68
    %70 = vmax.xlane.f32.xlu0 %v69
    %v71 = vpop.xlane.xlu0 %70
    %v72 = vsub.f32 %v65, %v71
    %v73 = vsub.f32 %v66, %v71
    %v74 = vmul.f32 %v72, 1.442695
    %v75 = vpow.pop %v74
    %v76 = vmul.f32 %v73, 1.442695
    %v77 = vpow.pop %v76
    %v78 = vsel %vm67, %v77, 0.0
    %v79 = vadd.f32 %v75, %v78
    %80 = vadd.xlane.f32.xlu0 %v79
    %v81 = vpop.xlane.xlu0 %80
    %v82 = vlog2.pop %v81
    %v83 = vmul.f32 %v82, 0.6931472
    %s84 = sadd.s32 0, 0
    %s85 = smul.u32 %s84, 8
    %v86 = vlaneseq
    %v87 = vshrl.u32 %v86, 7
    %v88 = vstv %s85
    %v89 = vadd.s32 %v88, %v87
    %vm90 = vcmp.lt.s32.totalorder %v89, 8
    %v91 = vsel %vm90, 1, 0
    %vm92 = vcmp.eq.s32.totalorder %v91, 1
    %v93 = vsel %vm92, %v72, 0.0
    %v94 = vsel %vm92, %v73, 0.0
    %v95 = vlaneseq
    %v96 = vand.u32 %v95, 127
    %v97 = vadd.s32 %v96, 128
    %v98 = vld [vmem:[%s56] sm:$0xff]
    %99 = vset.pattern.permute.xlu0 0
    %100 = vperm.xlu0 %99, %v98
    %v101 = vpop.permute.xlu0 %100
    %vm102 = vcmp.eq.s32.totalorder %v96, %v101
    %vm103 = vcmp.eq.s32.totalorder %v97, %v101
    %v104 = vsel %vm102, 0.9, 0.00073529413
    %v105 = vsel %vm103, 0.9, 0.00073529413
    %v106 = vmul.f32 %v104, %v93
    %v107 = vmul.f32 %v105, %v94
    %v108 = vsel %vm67, %v107, 0.0
    %v109 = vadd.f32 %v106, %v108
    %110 = vadd.xlane.f32.xlu0 %v109
    %v111 = vpop.xlane.xlu0 %110
    %v112 = vrot.slane %v111, 4
    %v113 = vadd.f32 %v111, %v112
    %v114 = vrot.slane %v113, 2
    %v115 = vadd.f32 %v113, %v114
    %v116 = vrot.slane %v115, 1
    %v117 = vadd.f32 %v115, %v116
    %s118 = vtos %v117
    %v119 = vsel %vm90, %v83, 0.0
    %vm120 = vcmask 7168
    %v121 = vsel %vm120, %v119, 0.0
    %122 = vadd.xlane.f32.xlu0 %v121
    %v123 = vpop.xlane.xlu0 %122
    %v124 = vrot.slane %v123, 4
    %v125 = vadd.f32 %v123, %v124
    %v126 = vrot.slane %v125, 2
    %v127 = vadd.f32 %v125, %v126
    %v128 = vrot.slane %v127, 1
    %v129 = vadd.f32 %v127, %v128
    %s130 = vtos %v129
    %s131 = ssub.f32 %s130, %s118
    %v132 = vld [vmem:[#allocation2] sm:$0x1]
    %v133 = vstv %s131
    %v134 = vadd.f32 %v132, %v133
    %135 = vst [vmem:[#allocation2] sm:$0x1] %v134
    // Predicated region
    $region18: #{tpu_custom_call.1} parent=1 // pred_check
      %p136 = pneg %p60
    $region19: #{tpu_custom_call.1} parent=1 // pred_check_branch
      %138 = sbr.rel (%p136) target = $region21
    $region20: #{tpu_custom_call.1} parent=1 // pred_region
      %v139 = vld [vmem:[#allocation2] sm:$0x1]
      %140 = vst [vmem:[#allocation6] sm:$0x1] %v139
    $region21: #{tpu_custom_call.1} parent=1 // pred_fallthru
      _
    // Predicated region
    $region22: #{tpu_custom_call.1} parent=1 // pred_check
      _
    $region23: #{tpu_custom_call.1} parent=1 // pred_check_branch
      %142 = sbr.rel (0) target = $region25
    $region24: #{tpu_custom_call.1} parent=1 // pred_region
      %s144 = ssub.s32 16, 16
      %145 = vsyncadd [#allocation5], %s144
      %s147 = sshll.u32 [#allocation6], 4
      %s148 = int_to_ptr.vmem [resolvable:$true] %s147
      %150 = dma.vmem_to_hbm [thread:$0]  %s148, 16, %s2, [#allocation5]
    $region25: #{tpu_custom_call.1} parent=1 // pred_fallthru
      _
    // Predicated region
    $region26: #{tpu_custom_call.1} parent=1 // pred_check
      _
    $region27: #{tpu_custom_call.1} parent=1 // pred_check_branch
      %152 = sbr.rel (0) target = $region29
    $region28: #{tpu_custom_call.1} parent=1 // pred_region
      %153 = dma.done [#allocation5], 16
    $region29: #{tpu_custom_call.1} parent=1 // pred_fallthru
      _
    %154 = vsyncpa [#allocation4], 1
    %155 = vsyncpa [#allocation5], 1

</llo_original>
